<compile_context>
chip_gen: v7x
topology: tpu7x:2x2x1
jax: 0.10.0
libtpu: 0.0.40
codegen_flags: <defaults>
</compile_context>

<pallas_src>
import functools

import jax
import jax.numpy as jnp
from jax.experimental import pallas as pl
from jax.experimental.pallas import tpu as pltpu

HIDDEN_DIM = 32
OUT_DIM = 5            # [mu_x, mu_y, sigma_x, sigma_y, rho] pre-activation
LANE_PAD = 128         # pad output columns to a full lane width
DEFAULT_ROW_TILE = 512 # row tile (multiple of 8, ~85% of HBM roofline per guide)


def hidden2normal_kernel(x_ref, w_ref, b_ref, o_ref):
    """Matmul + bias + column-wise sigmoid transforms for one row tile.

    x_ref: [TN, H]    (VMEM)
    w_ref: [H, 128]   (VMEM, columns >= 5 are zero padding; resident)
    b_ref: [1, 128]   (VMEM; resident)
    o_ref: [TN, 128]  (VMEM)
    """
    x = x_ref[...]
    # MXU matmul, f32 accumulation.
    y = jnp.dot(x, w_ref[...], preferred_element_type=jnp.float32) + b_ref[...]

    # Column index along the lane axis.
    col = jax.lax.broadcasted_iota(jnp.int32, y.shape, dimension=1)
    sig = jax.nn.sigmoid(y)

    # cols 0,1 : identity
    # cols 2,3 : 0.01 + 0.2 * sigmoid(.)
    # col  4   : 0.7 * sigmoid(.)
    # lanes >= 5 are padding and are sliced off by the wrapper.
    y = jnp.where(col < 2, y, jnp.where(col == 4, 0.7 * sig, 0.01 + 0.2 * sig))

    o_ref[...] = y.astype(o_ref.dtype)


def prepare_params(weight, bias):
    """One-time conversion of PyTorch-layout params to lane-padded kernel params.

    weight: [5, H] (PyTorch Linear layout), bias: [5]
    returns w_padded [H, 128], b_padded [1, 128]
    """
    out_dim, h = weight.shape
    w_padded = jnp.zeros((h, LANE_PAD), jnp.float32).at[:, :out_dim].set(
        weight.T.astype(jnp.float32))
    b_padded = jnp.zeros((1, LANE_PAD), jnp.float32).at[0, :out_dim].set(
        bias.astype(jnp.float32))
    return w_padded, b_padded


@functools.partial(jax.jit, static_argnames=("tn",))
def hidden2normal(hidden_state, w_padded, b_padded, *, tn=DEFAULT_ROW_TILE):
    """hidden_state: [N, H] f32; w_padded: [H, 128]; b_padded: [1, 128]."""
    n, h = hidden_state.shape
    x = hidden_state.astype(jnp.float32)

    # Small N: single full-extent block (legal even when N is not 8-aligned).
    # Large N: tile rows; last tile may be ragged (masked output writes).
    block_rows = n if n <= tn else tn
    grid = (pl.cdiv(n, block_rows),)

    out_padded = pl.pallas_call(
        hidden2normal_kernel,
        out_shape=jax.ShapeDtypeStruct((n, LANE_PAD), jnp.float32),
        grid_spec=pl.GridSpec(
            grid=grid,
            in_specs=[
                pl.BlockSpec((block_rows, h), lambda i: (i, 0)),
                pl.BlockSpec((h, LANE_PAD), lambda i: (0, 0)),   # resident
                pl.BlockSpec((1, LANE_PAD), lambda i: (0, 0)),   # resident
            ],
            out_specs=pl.BlockSpec((block_rows, LANE_PAD), lambda i: (i, 0)),
        ),
        compiler_params=pltpu.CompilerParams(
            dimension_semantics=("parallel",)),   # rows split across v7x's 2 TCs
    )(x, w_padded, b_padded)

    return out_padded[:, :OUT_DIM]


def reference_hidden2normal(hidden_state, weight, bias):
    """Pure-JAX reference mirroring the PyTorch forward."""
    normal = hidden_state @ weight.T + bias
    c23 = 0.01 + 0.2 * jax.nn.sigmoid(normal[:, 2:4])
    c4 = 0.7 * jax.nn.sigmoid(normal[:, 4:5])
    return jnp.concatenate([normal[:, :2], c23, c4], axis=1)


if __name__ == "__main__":
    key = jax.random.PRNGKey(0)
    k_x, k_w, k_b, k_x2 = jax.random.split(key, 4)

    h = HIDDEN_DIM

    # Deterministic Linear init (PyTorch-style uniform(-1/sqrt(H), 1/sqrt(H))).
    bound = 1.0 / jnp.sqrt(jnp.float32(h))
    weight = jax.random.uniform(k_w, (OUT_DIM, h), jnp.float32, -bound, bound)
    bias = jax.random.uniform(k_b, (OUT_DIM,), jnp.float32, -bound, bound)

    # Lane-padded params prepared once (outside the per-call path).
    w_padded, b_padded = prepare_params(weight, bias)
    w_padded = jax.block_until_ready(w_padded)
    b_padded = jax.block_until_ready(b_padded)

    # Small-N case (single full-extent block, no input padding).
    n_small = 6
    x_small = jax.random.normal(k_x, (n_small, h), dtype=jnp.float32)
    out_small = jax.block_until_ready(hidden2normal(x_small, w_padded, b_padded))
    ref_small = reference_hidden2normal(x_small, weight, bias)
    assert out_small.shape == (n_small, OUT_DIM)
    assert jnp.allclose(out_small, ref_small, atol=1e-5, rtol=1e-5), \
        "small-N mismatch vs reference"

    # Larger-N case exercising the tiled / pipelined path with a ragged last tile.
    n_big = 1000
    x_big = jax.random.normal(k_x2, (n_big, h), dtype=jnp.float32)
    out_big = jax.block_until_ready(hidden2normal(x_big, w_padded, b_padded, tn=256))
    ref_big = reference_hidden2normal(x_big, weight, bias)
    assert out_big.shape == (n_big, OUT_DIM)
    assert jnp.allclose(out_big, ref_big, atol=1e-5, rtol=1e-5), \
        "large-N mismatch vs reference"

    print("KERNEL_OK")
</pallas_src>

<mosaic_0001>
module attributes {stable_mosaic.version = 11 : i64} {
  func.func @hidden2normal_kernel(%arg0: i32, %arg1: memref<6x32xf32, #tpu.memory_space<vmem>>, %arg2: memref<32x128xf32, #tpu.memory_space<vmem>>, %arg3: memref<1x128xf32, #tpu.memory_space<vmem>>, %arg4: memref<6x128xf32, #tpu.memory_space<vmem>>) attributes {dimension_semantics = [#tpu.dimension_semantics<parallel>], iteration_bounds = array<i64: 1>, scalar_prefetch = 0 : i64, scratch_operands = 0 : i64, tpu.core_type = #tpu.core_type<tc>, window_params = [{transform_indices = @transform_0, window_bounds = array<i64: 6, 32>}, {pipeline_mode = #tpu.pipeline_mode<synchronous>, transform_indices = @transform_1, window_bounds = array<i64: 32, 128>}, {pipeline_mode = #tpu.pipeline_mode<synchronous>, transform_indices = @transform_2, window_bounds = array<i64: 1, 128>}, {transform_indices = @transform_3, window_bounds = array<i64: 6, 128>}]} {
    %c0 = arith.constant 0 : index
    %c0_0 = arith.constant 0 : index
    %0 = vector.load %arg1[%c0, %c0_0] : memref<6x32xf32, #tpu.memory_space<vmem>>, vector<6x32xf32>
    %c0_1 = arith.constant 0 : index
    %c0_2 = arith.constant 0 : index
    %1 = vector.load %arg2[%c0_1, %c0_2] : memref<32x128xf32, #tpu.memory_space<vmem>>, vector<32x128xf32>
    %cst = arith.constant dense<0.000000e+00> : vector<6x128xf32>
    %2 = tpu.matmul %0, %1, %cst {dimension_numbers = #tpu.dot_dimension_numbers<[1], [0], [0], [1], [0, 0, 1, 1], [], []>} : vector<6x32xf32>, vector<32x128xf32>, vector<6x128xf32> -> vector<6x128xf32>
    %c0_3 = arith.constant 0 : index
    %c0_4 = arith.constant 0 : index
    %3 = vector.load %arg3[%c0_3, %c0_4] : memref<1x128xf32, #tpu.memory_space<vmem>>, vector<1x128xf32>
    %4 = vector.broadcast %3 : vector<1x128xf32> to vector<6x128xf32>
    %5 = arith.addf %2, %4 : vector<6x128xf32>
    %6 = tpu.iota {dimensions = array<i32: 1>} : vector<6x128xi32>
    %7 = arith.negf %5 : vector<6x128xf32>
    %8 = math.exp %7 : vector<6x128xf32>
    %cst_5 = arith.constant 1.000000e+00 : f32
    %9 = vector.broadcast %cst_5 : f32 to vector<6x128xf32>
    %10 = arith.addf %9, %8 : vector<6x128xf32>
    %11 = arith.divf %9, %10 : vector<6x128xf32>
    %c2_i32 = arith.constant 2 : i32
    %12 = vector.broadcast %c2_i32 : i32 to vector<6x128xi32>
    %13 = arith.cmpi slt, %6, %12 : vector<6x128xi32>
    %c4_i32 = arith.constant 4 : i32
    %14 = vector.broadcast %c4_i32 : i32 to vector<6x128xi32>
    %15 = arith.cmpi eq, %6, %14 : vector<6x128xi32>
    %cst_6 = arith.constant 0.699999988 : f32
    %16 = vector.broadcast %cst_6 : f32 to vector<6x128xf32>
    %17 = arith.mulf %16, %11 : vector<6x128xf32>
    %cst_7 = arith.constant 2.000000e-01 : f32
    %18 = vector.broadcast %cst_7 : f32 to vector<6x128xf32>
    %19 = arith.mulf %18, %11 : vector<6x128xf32>
    %cst_8 = arith.constant 0.00999999977 : f32
    %20 = vector.broadcast %cst_8 : f32 to vector<6x128xf32>
    %21 = arith.addf %20, %19 : vector<6x128xf32>
    %22 = arith.select %15, %17, %21 : vector<6x128xi1>, vector<6x128xf32>
    %23 = arith.select %13, %5, %22 : vector<6x128xi1>, vector<6x128xf32>
    %c0_9 = arith.constant 0 : index
    %c0_10 = arith.constant 0 : index
    %24 = vector.load %arg4[%c0_9, %c0_10] : memref<6x128xf32, #tpu.memory_space<vmem>>, vector<6x128xf32>
    tpu.vector_store %arg4[%c0_9, %c0_10], %23 {strides = array<i32>} : memref<6x128xf32, #tpu.memory_space<vmem>>, vector<6x128xf32>,
    return
  }
  func.func @transform_0(%arg0: i32) -> (i32, i32) {
    %c0_i32 = arith.constant 0 : i32
    %c0_i32_0 = arith.constant 0 : i32
    return %arg0, %c0_i32 : i32, i32
  }
  func.func @transform_1(%arg0: i32) -> (i32, i32) {
    %c0_i32 = arith.constant 0 : i32
    %c0_i32_0 = arith.constant 0 : i32
    %c0_i32_1 = arith.constant 0 : i32
    return %c0_i32, %c0_i32_0 : i32, i32
  }
  func.func @transform_2(%arg0: i32) -> (i32, i32) {
    %c0_i32 = arith.constant 0 : i32
    %c0_i32_0 = arith.constant 0 : i32
    %c0_i32_1 = arith.constant 0 : i32
    return %c0_i32, %c0_i32_0 : i32, i32
  }
  func.func @transform_3(%arg0: i32) -> (i32, i32) {
    %c0_i32 = arith.constant 0 : i32
    %c0_i32_0 = arith.constant 0 : i32
    return %arg0, %c0_i32 : i32, i32
  }
}

</mosaic_0001>

<llo_original>
// kernel: hidden2normal.1
$region0: #{hidden2normal.1}
  #allocation0 [shape = 'u32[]', space=smem, size = 0x4, offset = 0x4, fixed_abs, tag = 'smem constant byte address 0x4 - core index']
  #allocation1 [shape = 'u32[144,128]{1,0:T(1,128)}', space=vmem, size = 0x12000, scoped, tag = 'internal scratch']
  %s0 = inlined_call_operand.hbm [shape: f32[6,32], index: 0, kind: input, shape index: {}]
  %s1 = inlined_call_operand.hbm [shape: f32[32,128], index: 1, kind: input, shape index: {}]
  %s2 = inlined_call_operand.vmem [shape: f32[1,128], index: 2, kind: input, shape index: {}]
  %s3 = inlined_call_operand.hbm [shape: f32[6,128], index: 3, kind: output, shape index: {}]
  %s4 = sld [smem:[#allocation0]]
  $region30: #{hidden2normal.1} parent=0
    _
  %s6 = ssub.s32 1, %s4
  %s7 = scalar_select 0, %s6, %s4
  $region1: #{hidden2normal.1} parent=0
    #allocation2 [shape = 'u8[4096]{0}', space=vmem, size = 0x1000, scoped, tag = 'input window, operand 0, single buffered']
    #allocation3 [shape = 's32[1]{0}', space=sflag, size = 0x4, scoped, tag = 'scoped memory for hidden2normal.1']
    #allocation4 [shape = 's32[1]{0}', space=sflag, size = 0x4, scoped, tag = 'scoped memory for hidden2normal.1']
    #allocation5 [shape = 'u8[16384]{0}', space=vmem, size = 0x4000, scoped, tag = 'input window, operand 1, single buffered']
    #allocation6 [shape = 's32[1]{0}', space=sflag, size = 0x4, scoped, tag = 'scoped memory for hidden2normal.1']
    #allocation7 [shape = 'u8[4096]{0}', space=vmem, size = 0x1000, scoped, tag = 'output window, operand 0, single buffered']
    %8 = vsyncpa [#allocation3], 0
    %9 = vsyncpa [#allocation6], 0
    %10 = vsyncpa [#allocation4], 0
    // Predicated region
    $region2: #{hidden2normal.1} parent=1 // pred_check
      _
    $region3: #{hidden2normal.1} parent=1 // pred_check_branch
      %12 = sbr.rel (0) target = $region5
    $region4: #{hidden2normal.1} parent=1 // pred_region
      %s14 = ssub.s32 128, 128
      %15 = vsyncadd [#allocation3], %s14
      %s17 = sshll.u32 [#allocation2], 4
      %s18 = int_to_ptr.vmem [resolvable:$true] %s17
      %20 = dma.hbm_to_vmem [thread:$0]  %s0, 128, %s18, [#allocation3]
    $region5: #{hidden2normal.1} parent=1 // pred_fallthru
      _
    // Predicated region
    $region6: #{hidden2normal.1} parent=1 // pred_check
      _
    $region7: #{hidden2normal.1} parent=1 // pred_check_branch
      %22 = sbr.rel (0) target = $region9
    $region8: #{hidden2normal.1} parent=1 // pred_region
      %s24 = ssub.s32 512, 512
      %25 = vsyncadd [#allocation6], %s24
      %s26 = sshll.u32 [#allocation5], 4
      %s27 = int_to_ptr.vmem [resolvable:$true] %s26
      %32 = dma.hbm_to_vmem [thread:$0]  %s1, 512, %s27, [#allocation6], 128, 128, 8
    $region9: #{hidden2normal.1} parent=1 // pred_fallthru
      _
    // Predicated region
    $region10: #{hidden2normal.1} parent=1 // pred_check
      _
    $region11: #{hidden2normal.1} parent=1 // pred_check_branch
      %34 = sbr.rel (0) target = $region13
    $region12: #{hidden2normal.1} parent=1 // pred_region
      _
    $region13: #{hidden2normal.1} parent=1 // pred_fallthru
      _
    // Predicated region
    $region14: #{hidden2normal.1} parent=1 // pred_check
      _
    $region15: #{hidden2normal.1} parent=1 // pred_check_branch
      %36 = sbr.rel (0) target = $region17
    $region16: #{hidden2normal.1} parent=1 // pred_region
      %37 = dma.done [#allocation3], 128
    $region17: #{hidden2normal.1} parent=1 // pred_fallthru
      _
    // Predicated region
    $region18: #{hidden2normal.1} parent=1 // pred_check
      _
    $region19: #{hidden2normal.1} parent=1 // pred_check_branch
      %39 = sbr.rel (0) target = $region21
    $region20: #{hidden2normal.1} parent=1 // pred_region
      %40 = dma.done [#allocation6], 512
    $region21: #{hidden2normal.1} parent=1 // pred_fallthru
      _
    %v41 = vld [vmem:[#allocation2] sm:$0x3f]
    %v42 = vld [vmem:[#allocation5] sm:$0xff]
    %v43 = vld [vmem:[#allocation5 + $0x8] sm:$0xff]
    %v44 = vld [vmem:[#allocation5 + $0x10] sm:$0xff]
    %v45 = vld [vmem:[#allocation5 + $0x18] sm:$0xff]
    %v46 = vld [vmem:[%s2] sm:$0x1]
    %v48 = vlaneseq
    %v49 = vshrl.u32 %v48, 7
    %v50 = vsub.s32 0, %v49
    %v51 = vrot.slane %v46, %v50
    %vm53 = vcmask 261120
    %v55 = vsel %vm53, %v41, 0
    %57 = vmatprep.subr.mxu0 0.0
    %58 = vmatpush1.msra.mxu0 %v42
    %59 = vmatprep.subr.mxu0 0.0
    %60 = vmatpush1.msra.mxu0 %v43
    %61 = vmatprep.subr.mxu0 0.0
    %62 = vmatpush1.msra.mxu0 %v44
    %63 = vmatprep.subr.mxu0 0.0
    %64 = vmatpush1.msra.mxu0 %v45
    %65 = vmatprep.subr.mxu0 0.0
    %66 = vmatpush1.msra.mxu0 0.0
    %67 = vmatprep.subr.mxu0 0.0
    %68 = vmatpush1.msra.mxu0 0.0
    %69 = vmatprep.subr.mxu0 0.0
    %70 = vmatpush1.msra.mxu0 0.0
    %71 = vmatprep.subr.mxu0 0.0
    %72 = vmatpush1.msra.mxu0 0.0
    %73 = vmatprep.subr.mxu0 0.0
    %74 = vmatpush1.msra.mxu0 0.0
    %75 = vmatprep.subr.mxu0 0.0
    %76 = vmatpush1.msra.mxu0 0.0
    %77 = vmatprep.subr.mxu0 0.0
    %78 = vmatpush1.msra.mxu0 0.0
    %79 = vmatprep.subr.mxu0 0.0
    %80 = vmatpush1.msra.mxu0 0.0
    %81 = vmatprep.subr.mxu0 0.0
    %82 = vmatpush1.msra.mxu0 0.0
    %83 = vmatprep.subr.mxu0 0.0
    %84 = vmatpush1.msra.mxu0 0.0
    %85 = vmatprep.subr.mxu0 0.0
    %86 = vmatpush1.msra.mxu0 0.0
    %87 = vmatprep.subr.mxu0 0.0
    %88 = vmatpush1.msra.mxu0 0.0
    %89 = vmatprep.subr.mxu0 0.0
    %90 = vmatpush1.msra.mxu0 0.0
    %91 = vmatprep.subr.mxu0 0.0
    %92 = vmatpush1.msra.mxu0 0.0
    %93 = vmatprep.subr.mxu0 0.0
    %94 = vmatpush1.msra.mxu0 0.0
    %95 = vmatprep.subr.mxu0 0.0
    %96 = vmatpush1.msra.mxu0 0.0
    %97 = vmatprep.subr.mxu0 0.0
    %98 = vmatpush1.msra.mxu0 0.0
    %99 = vmatprep.subr.mxu0 0.0
    %100 = vmatpush1.msra.mxu0 0.0
    %101 = vmatprep.subr.mxu0 0.0
    %102 = vmatpush1.msra.mxu0 0.0
    %103 = vmatprep.subr.mxu0 0.0
    %104 = vmatpush1.msra.mxu0 0.0
    %105 = vmatprep.subr.mxu0 0.0
    %106 = vmatpush1.msra.mxu0 0.0
    %107 = vmatprep.subr.mxu0 0.0
    %108 = vmatpush1.msra.mxu0 0.0
    %109 = vmatprep.subr.mxu0 0.0
    %110 = vmatpush1.msra.mxu0 0.0
    %111 = vmatprep.subr.mxu0 0.0
    %112 = vmatpush1.msra.mxu0 0.0
    %113 = vmatprep.subr.mxu0 0.0
    %114 = vmatpush1.msra.mxu0 0.0
    %115 = vmatprep.subr.mxu0 0.0
    %116 = vmatpush1.msra.mxu0 0.0
    %117 = vmatprep.subr.mxu0 0.0
    %118 = vmatpush1.msra.mxu0 0.0
    %119 = vmatprep.subr.mxu0 0.0
    %120 = vmatpush1.msra.mxu0 0.0
    %121 = vmatprep.mubr.f32.mxu0 0.0
    %122 = vmatmul.mubr.f32.gmra.mrb[0].mxu0 %v55
    %v123 = vpop.f32.mrb[0].mxu0
    %v124 = vadd.f32 %v51, %v123
    %v125 = vpop.f32.mrb[0].mxu0
    %126 = vdwg.mxu0
    %v127 = vlaneseq
    %v128 = vand.u32 %v127, 127
    %v129 = vxor.u32 %v124, 2147483648
    %v130 = vmul.f32 %v129, 1.442695
    %v131 = vpow.pop %v130
    %v132 = vadd.f32 %v131, 1.0
    %v133 = vrcp.pop %v132
    %v134 = vmul.f32 1.0, %v133
    %vm135 = vcmp.lt.s32.totalorder %v128, 2
    %vm136 = vcmp.eq.s32.totalorder %v128, 4
    %v137 = vmul.f32 %v134, 0.7
    %v138 = vmul.f32 %v134, 0.2
    %v139 = vadd.f32 %v138, 0.01
    %v140 = vsel %vm136, %v137, %v139
    %v141 = vsel %vm135, %v124, %v140
    %142 = vst [vmem:[#allocation7] sm:$0x3f] %v141
    // Predicated region
    $region22: #{hidden2normal.1} parent=1 // pred_check
      _
    $region23: #{hidden2normal.1} parent=1 // pred_check_branch
      %144 = sbr.rel (0) target = $region25
    $region24: #{hidden2normal.1} parent=1 // pred_region
      %s146 = ssub.s32 128, 128
      %147 = vsyncadd [#allocation4], %s146
      %s149 = sshll.u32 [#allocation7], 4
      %s150 = int_to_ptr.vmem [resolvable:$true] %s149
      %152 = dma.vmem_to_hbm [thread:$0]  %s150, 128, %s3, [#allocation4]
    $region25: #{hidden2normal.1} parent=1 // pred_fallthru
      _
    // Predicated region
    $region26: #{hidden2normal.1} parent=1 // pred_check
      _
    $region27: #{hidden2normal.1} parent=1 // pred_check_branch
      %154 = sbr.rel (0) target = $region29
    $region28: #{hidden2normal.1} parent=1 // pred_region
      %155 = dma.done [#allocation4], 128
    $region29: #{hidden2normal.1} parent=1 // pred_fallthru
      _
    %156 = vsyncpa [#allocation3], 1
    %157 = vsyncpa [#allocation6], 1
    %158 = vsyncpa [#allocation4], 1

</llo_original>
